<compile_context>
chip_gen: v7x
topology: tpu7x:2x2x1
jax: 0.10.0
libtpu: 0.0.40
codegen_flags: <defaults>
</compile_context>

<pallas_src>
import functools
import math

import jax
import jax.numpy as jnp
from jax import lax
from jax.experimental import pallas as pl
from jax.experimental.pallas import tpu as pltpu


def _round_up(n, m):
    return ((n + m - 1) // m) * m


# Fast-path thresholds: table must fit comfortably in scoped VMEM on every
# generation (v5e default 16 MiB) and the one-hot matmul must stay cheap.
_FAST_MAX_VOCAB = 2048
_FAST_MAX_TABLE_BYTES = 4 * 1024 * 1024


# ---------------------------------------------------------------------------
# Fast path: VMEM-resident table, gather as one-hot @ table on the MXU.
# ---------------------------------------------------------------------------
def _onehot_embed_kernel(ids_ref, table_ref, o_ref, *, scale):
    ids = ids_ref[...]                                     # (tile, 1) int32
    tile = ids.shape[0]
    vocab = table_ref.shape[0]
    iota = lax.broadcasted_iota(jnp.int32, (tile, vocab), 1)
    onehot = (iota == ids).astype(table_ref.dtype)         # (tile, V)
    acc = jnp.dot(onehot, table_ref[...], preferred_element_type=jnp.float32)
    o_ref[...] = (acc * scale).astype(o_ref.dtype)


# ---------------------------------------------------------------------------
# General path: HBM table, manual double-buffered row-gather DMA.
# ---------------------------------------------------------------------------
def _gather_embed_kernel(ids_ref, table_hbm, o_ref, buf, sem, *, tile, scale):
    """ids_ref: SMEM (M_pad,) int32 (scalar prefetch)
    table_hbm: HBM (V, D) (pl.ANY, manual DMA)
    o_ref    : VMEM (tile, D) output tile (lane-dense slab)
    buf      : VMEM (2, tile, D) double-buffered landing buffer
    sem      : (2,) DMA semaphores — one shared semaphore per slot."""
    i = pl.program_id(0)
    n = pl.num_programs(0)

    def issue_tile(tile_idx, slot):
        base = tile_idx * tile

        def body(r, carry):
            row = ids_ref[base + r]
            pltpu.make_async_copy(
                table_hbm.at[row], buf.at[slot, r], sem.at[slot]).start()
            return carry

        # Unrolled issue loop: descriptor pushes co-issue with scalar work.
        lax.fori_loop(0, tile, body, 0, unroll=8)

    # Prologue: prime slot 0 with tile 0's rows.
    @pl.when(i == 0)
    def _():
        issue_tile(0, 0)

    # Prefetch tile i+1 into the other slot BEFORE waiting on tile i (this
    # also keeps the SMEM id reads ahead of the .wait()).
    @pl.when(i + 1 < n)
    def _():
        issue_tile(i + 1, (i + 1) % 2)

    slot = i % 2
    # Single bulk wait: all `tile` row copies signaled sem[slot]; one wait
    # descriptor covering the whole (tile, D) slot accounts for all of them.
    pltpu.make_async_copy(buf.at[slot], buf.at[slot], sem.at[slot]).wait()

    # Scale by sqrt(d_model) (VPU work, hidden under the DMAs) and store the
    # full lane-dense (tile, D) tile.
    o_ref[...] = (buf[slot] * scale).astype(o_ref.dtype)


@functools.partial(jax.jit, static_argnames=("tile",))
def embedding(x, table, *, tile=None):
    """x: integer ids (any shape). table: (vocab, d_model).
    Returns x.shape + (d_model,) with dtype table.dtype, = table[x]*sqrt(D)."""
    V, D = table.shape
    scale = float(math.sqrt(D))
    itemsize = jnp.dtype(table.dtype).itemsize

    ids = x.reshape(-1).astype(jnp.int32)
    # Defensive clamp: an out-of-range id would otherwise drive an OOB DMA.
    ids = jnp.clip(ids, 0, V - 1)
    M = ids.shape[0]

    use_fast = (V <= _FAST_MAX_VOCAB) and (V * D * itemsize <= _FAST_MAX_TABLE_BYTES)

    if tile is None:
        if use_fast:
            tile = 256
        else:
            # Keep 2x landing buffer + 2x output buffer (4*tile*D*bytes) well
            # inside the smallest default scoped-VMEM budget (16 MiB on v5e,
            # 32 MiB on v6e/v7x) so no vmem_limit override is needed.
            tile = max(8, min(512, (12 << 20) // max(1, 4 * D * itemsize)))
    tile = max(8, min(_round_up(M, 8), (tile // 8) * 8))
    M_pad = _round_up(M, tile)
    ids_p = jnp.pad(ids, (0, M_pad - M))   # pad with id 0; rows sliced off below
    grid = (M_pad // tile,)

    # TODO(synk): if d_model is not a multiple of 128, pad the table's feature
    # dim once outside this call to keep output stores fully lane-dense.

    if use_fast:
        out = pl.pallas_call(
            functools.partial(_onehot_embed_kernel, scale=scale),
            out_shape=jax.ShapeDtypeStruct((M_pad, D), table.dtype),
            grid_spec=pltpu.PrefetchScalarGridSpec(
                num_scalar_prefetch=0,
                grid=grid,
                in_specs=[
                    pl.BlockSpec((tile, 1), lambda i: (i, 0)),   # ids (VMEM)
                    pl.BlockSpec((V, D), lambda i: (0, 0)),      # resident table
                ],
                out_specs=pl.BlockSpec((tile, D), lambda i: (i, 0)),
            ),
            compiler_params=pltpu.CompilerParams(
                dimension_semantics=("parallel",),   # megacore-shardable
            ),
        )(ids_p.reshape(M_pad, 1), table)
    else:
        out = pl.pallas_call(
            functools.partial(_gather_embed_kernel, tile=tile, scale=scale),
            out_shape=jax.ShapeDtypeStruct((M_pad, D), table.dtype),
            grid_spec=pltpu.PrefetchScalarGridSpec(
                num_scalar_prefetch=1,                    # ids -> SMEM
                grid=grid,
                in_specs=[
                    pl.BlockSpec(memory_space=pl.ANY),    # table stays in HBM
                ],
                out_specs=pl.BlockSpec((tile, D), lambda i, ids: (i, 0)),
                scratch_shapes=[
                    pltpu.VMEM((2, tile, D), table.dtype),  # double-buffered landing
                    pltpu.SemaphoreType.DMA((2,)),          # one shared sem per slot
                ],
            ),
            # Cross-grid-step scratch state (prefetch into the other slot)
            # requires sequential execution of the grid axis.
            compiler_params=pltpu.CompilerParams(
                dimension_semantics=("arbitrary",),
            ),
        )(ids_p, table)

    return out[:M].reshape(*x.shape, D)


def reference(x, table):
    return jnp.take(table, x, axis=0) * math.sqrt(table.shape[1])


if __name__ == "__main__":
    key = jax.random.PRNGKey(0)
    k1, k2, k3, k4 = jax.random.split(key, 4)

    # --- Case 1: small vocab (module test shape) -> one-hot MXU fast path ---
    V1, D1, B1, S1 = 64, 128, 2, 8
    tbl1 = jax.random.normal(k1, (V1, D1), dtype=jnp.float32) * (D1 ** -0.5)
    ids1 = jax.random.randint(k2, (B1, S1), 0, V1, dtype=jnp.int32)
    out1 = jax.block_until_ready(embedding(ids1, tbl1))
    ref1 = reference(ids1, tbl1)
    assert out1.shape == (B1, S1, D1) and out1.dtype == tbl1.dtype
    assert jnp.allclose(out1, ref1, atol=1e-5, rtol=1e-5), "fast path mismatch"

    # --- Case 2: larger vocab -> HBM gather path (double-buffered DMA) ---
    V2, D2, B2, S2 = 4096, 128, 2, 64
    tbl2 = jax.random.normal(k3, (V2, D2), dtype=jnp.float32) * (D2 ** -0.5)
    ids2 = jax.random.randint(k4, (B2, S2), 0, V2, dtype=jnp.int32)
    out2 = jax.block_until_ready(embedding(ids2, tbl2, tile=32))  # grid=4: exercises pipelining
    ref2 = reference(ids2, tbl2)
    assert out2.shape == (B2, S2, D2) and out2.dtype == tbl2.dtype
    assert jnp.allclose(out2, ref2, atol=1e-5, rtol=1e-5), "gather path mismatch"

    print("KERNEL_OK")
</pallas_src>

<mosaic_0001>
module attributes {stable_mosaic.version = 11 : i64} {
  func.func @_onehot_embed_kernel(%arg0: i32, %arg1: memref<16x1xi32, #tpu.memory_space<vmem>>, %arg2: memref<64x128xf32, #tpu.memory_space<vmem>>, %arg3: memref<16x128xf32, #tpu.memory_space<vmem>>) attributes {dimension_semantics = [#tpu.dimension_semantics<parallel>], iteration_bounds = array<i64: 1>, scalar_prefetch = 0 : i64, scratch_operands = 0 : i64, tpu.core_type = #tpu.core_type<tc>, window_params = [{transform_indices = @transform_0, window_bounds = array<i64: 16, 1>}, {pipeline_mode = #tpu.pipeline_mode<synchronous>, transform_indices = @transform_1, window_bounds = array<i64: 64, 128>}, {transform_indices = @transform_2, window_bounds = array<i64: 16, 128>}]} {
    %c0 = arith.constant 0 : index
    %c0_0 = arith.constant 0 : index
    %0 = vector.load %arg1[%c0, %c0_0] : memref<16x1xi32, #tpu.memory_space<vmem>>, vector<16x1xi32>
    %1 = tpu.iota {dimensions = array<i32: 1>} : vector<16x64xi32>
    %2 = vector.broadcast %0 : vector<16x1xi32> to vector<16x64xi32>
    %3 = arith.cmpi eq, %1, %2 : vector<16x64xi32>
    %4 = arith.extui %3 : vector<16x64xi1> to vector<16x64xi32>
    %5 = arith.sitofp %4 : vector<16x64xi32> to vector<16x64xf32>
    %c0_1 = arith.constant 0 : index
    %c0_2 = arith.constant 0 : index
    %6 = vector.load %arg2[%c0_1, %c0_2] : memref<64x128xf32, #tpu.memory_space<vmem>>, vector<64x128xf32>
    %cst = arith.constant dense<0.000000e+00> : vector<16x128xf32>
    %7 = tpu.matmul %5, %6, %cst {dimension_numbers = #tpu.dot_dimension_numbers<[1], [0], [0], [1], [0, 0, 1, 1], [], []>} : vector<16x64xf32>, vector<64x128xf32>, vector<16x128xf32> -> vector<16x128xf32>
    %cst_3 = arith.constant 11.3137083 : f32
    %8 = vector.broadcast %cst_3 : f32 to vector<16x128xf32>
    %9 = arith.mulf %7, %8 : vector<16x128xf32>
    %c0_4 = arith.constant 0 : index
    %c0_5 = arith.constant 0 : index
    %10 = vector.load %arg3[%c0_4, %c0_5] : memref<16x128xf32, #tpu.memory_space<vmem>>, vector<16x128xf32>
    tpu.vector_store %arg3[%c0_4, %c0_5], %9 {strides = array<i32>} : memref<16x128xf32, #tpu.memory_space<vmem>>, vector<16x128xf32>,
    return
  }
  func.func @transform_0(%arg0: i32) -> (i32, i32) {
    %c0_i32 = arith.constant 0 : i32
    %c0_i32_0 = arith.constant 0 : i32
    return %arg0, %c0_i32 : i32, i32
  }
  func.func @transform_1(%arg0: i32) -> (i32, i32) {
    %c0_i32 = arith.constant 0 : i32
    %c0_i32_0 = arith.constant 0 : i32
    %c0_i32_1 = arith.constant 0 : i32
    return %c0_i32, %c0_i32_0 : i32, i32
  }
  func.func @transform_2(%arg0: i32) -> (i32, i32) {
    %c0_i32 = arith.constant 0 : i32
    %c0_i32_0 = arith.constant 0 : i32
    return %arg0, %c0_i32 : i32, i32
  }
}

</mosaic_0001>

<llo_original>
// kernel: embedding.1
$region0: #{embedding.1}
  #allocation0 [shape = 'u32[]', space=smem, size = 0x4, offset = 0x4, fixed_abs, tag = 'smem constant byte address 0x4 - core index']
  #allocation1 [shape = 'u32[144,128]{1,0:T(1,128)}', space=vmem, size = 0x12000, scoped, tag = 'internal scratch']
  %s0 = inlined_call_operand.vmem [shape: s32[16,1], index: 0, kind: input, shape index: {}]
  %s1 = inlined_call_operand.hbm [shape: f32[64,128], index: 1, kind: input, shape index: {}]
  %s2 = inlined_call_operand.hbm [shape: f32[16,128], index: 2, kind: output, shape index: {}]
  %s3 = sld [smem:[#allocation0]]
  $region22: #{embedding.1} parent=0
    _
  %s5 = ssub.s32 1, %s3
  %s6 = scalar_select 0, %s5, %s3
  $region1: #{embedding.1} parent=0
    #allocation2 [shape = 'u8[32768]{0}', space=vmem, size = 0x8000, scoped, tag = 'input window, operand 1, single buffered']
    #allocation3 [shape = 's32[1]{0}', space=sflag, size = 0x4, scoped, tag = 'scoped memory for embedding.1']
    #allocation4 [shape = 's32[1]{0}', space=sflag, size = 0x4, scoped, tag = 'scoped memory for embedding.1']
    #allocation5 [shape = 'u8[8192]{0}', space=vmem, size = 0x2000, scoped, tag = 'output window, operand 0, single buffered']
    %7 = vsyncpa [#allocation3], 0
    %8 = vsyncpa [#allocation4], 0
    // Predicated region
    $region2: #{embedding.1} parent=1 // pred_check
      _
    $region3: #{embedding.1} parent=1 // pred_check_branch
      %10 = sbr.rel (0) target = $region5
    $region4: #{embedding.1} parent=1 // pred_region
      _
    $region5: #{embedding.1} parent=1 // pred_fallthru
      _
    // Predicated region
    $region6: #{embedding.1} parent=1 // pred_check
      _
    $region7: #{embedding.1} parent=1 // pred_check_branch
      %12 = sbr.rel (0) target = $region9
    $region8: #{embedding.1} parent=1 // pred_region
      %s14 = ssub.s32 1024, 1024
      %15 = vsyncadd [#allocation3], %s14
      %s16 = sshll.u32 [#allocation2], 4
      %s17 = int_to_ptr.vmem [resolvable:$true] %s16
      %22 = dma.hbm_to_vmem [thread:$0]  %s1, 1024, %s17, [#allocation3], 128, 128, 8
    $region9: #{embedding.1} parent=1 // pred_fallthru
      _
    // Predicated region
    $region10: #{embedding.1} parent=1 // pred_check
      _
    $region11: #{embedding.1} parent=1 // pred_check_branch
      %24 = sbr.rel (0) target = $region13
    $region12: #{embedding.1} parent=1 // pred_region
      %25 = dma.done [#allocation3], 1024
    $region13: #{embedding.1} parent=1 // pred_fallthru
      _
    %v26 = vld [vmem:[%s0] sm:$0xff]
    %v27 = vld [vmem:[%s0 + $0x8] sm:$0xff]
    %v28 = vlaneseq
    %v29 = vand.u32 %v28, 127
    %30 = vset.pattern.permute.xlu0 0
    %31 = vperm.xlu0 %30, %v26
    %v32 = vpop.permute.xlu0 %31
    %33 = vset.pattern.permute.xlu0 0
    %34 = vperm.xlu0 %33, %v27
    %v35 = vpop.permute.xlu0 %34
    %vm36 = vcmp.eq.s32.totalorder %v29, %v32
    %vm37 = vcmp.eq.s32.totalorder %v29, %v35
    %v38 = vsel %vm36, 1, 0
    %v39 = vsel %vm37, 1, 0
    %v40 = vcvt.s32.f32 %v38
    %v41 = vcvt.s32.f32 %v39
    %v42 = vld [vmem:[#allocation2] sm:$0xff]
    %v43 = vld [vmem:[#allocation2 + $0x8] sm:$0xff]
    %v44 = vld [vmem:[#allocation2 + $0x10] sm:$0xff]
    %v45 = vld [vmem:[#allocation2 + $0x18] sm:$0xff]
    %v46 = vld [vmem:[#allocation2 + $0x20] sm:$0xff]
    %v47 = vld [vmem:[#allocation2 + $0x28] sm:$0xff]
    %v48 = vld [vmem:[#allocation2 + $0x30] sm:$0xff]
    %v49 = vld [vmem:[#allocation2 + $0x38] sm:$0xff]
    %vm50 = vcmask 523264
    %v52 = vsel %vm50, %v40, 0
    %v55 = vsel %vm50, %v41, 0
    %57 = vmatprep.subr.mxu0 0.0
    %58 = vmatpush1.msra.mxu0 %v42
    %59 = vmatprep.subr.mxu0 0.0
    %60 = vmatpush1.msra.mxu0 %v43
    %61 = vmatprep.subr.mxu0 0.0
    %62 = vmatpush1.msra.mxu0 %v44
    %63 = vmatprep.subr.mxu0 0.0
    %64 = vmatpush1.msra.mxu0 %v45
    %65 = vmatprep.subr.mxu0 0.0
    %66 = vmatpush1.msra.mxu0 %v46
    %67 = vmatprep.subr.mxu0 0.0
    %68 = vmatpush1.msra.mxu0 %v47
    %69 = vmatprep.subr.mxu0 0.0
    %70 = vmatpush1.msra.mxu0 %v48
    %71 = vmatprep.subr.mxu0 0.0
    %72 = vmatpush1.msra.mxu0 %v49
    %73 = vmatprep.subr.mxu0 0.0
    %74 = vmatpush1.msra.mxu0 0.0
    %75 = vmatprep.subr.mxu0 0.0
    %76 = vmatpush1.msra.mxu0 0.0
    %77 = vmatprep.subr.mxu0 0.0
    %78 = vmatpush1.msra.mxu0 0.0
    %79 = vmatprep.subr.mxu0 0.0
    %80 = vmatpush1.msra.mxu0 0.0
    %81 = vmatprep.subr.mxu0 0.0
    %82 = vmatpush1.msra.mxu0 0.0
    %83 = vmatprep.subr.mxu0 0.0
    %84 = vmatpush1.msra.mxu0 0.0
    %85 = vmatprep.subr.mxu0 0.0
    %86 = vmatpush1.msra.mxu0 0.0
    %87 = vmatprep.subr.mxu0 0.0
    %88 = vmatpush1.msra.mxu0 0.0
    %89 = vmatprep.subr.mxu0 0.0
    %90 = vmatpush1.msra.mxu0 0.0
    %91 = vmatprep.subr.mxu0 0.0
    %92 = vmatpush1.msra.mxu0 0.0
    %93 = vmatprep.subr.mxu0 0.0
    %94 = vmatpush1.msra.mxu0 0.0
    %95 = vmatprep.subr.mxu0 0.0
    %96 = vmatpush1.msra.mxu0 0.0
    %97 = vmatprep.subr.mxu0 0.0
    %98 = vmatpush1.msra.mxu0 0.0
    %99 = vmatprep.subr.mxu0 0.0
    %100 = vmatpush1.msra.mxu0 0.0
    %101 = vmatprep.subr.mxu0 0.0
    %102 = vmatpush1.msra.mxu0 0.0
    %103 = vmatprep.subr.mxu0 0.0
    %104 = vmatpush1.msra.mxu0 0.0
    %105 = vmatprep.subr.mxu0 0.0
    %106 = vmatpush1.msra.mxu0 0.0
    %107 = vmatprep.subr.mxu0 0.0
    %108 = vmatpush1.msra.mxu0 0.0
    %109 = vmatprep.subr.mxu0 0.0
    %110 = vmatpush1.msra.mxu0 0.0
    %111 = vmatprep.subr.mxu0 0.0
    %112 = vmatpush1.msra.mxu0 0.0
    %113 = vmatprep.subr.mxu0 0.0
    %114 = vmatpush1.msra.mxu0 0.0
    %115 = vmatprep.subr.mxu0 0.0
    %116 = vmatpush1.msra.mxu0 0.0
    %117 = vmatprep.subr.mxu0 0.0
    %118 = vmatpush1.msra.mxu0 0.0
    %119 = vmatprep.subr.mxu0 0.0
    %120 = vmatpush1.msra.mxu0 0.0
    %121 = vmatprep.mubr.f32.mxu0 0.0
    %122 = vmatmul.mubr.f32.gmra.mrb[0].mxu0 %v52
    %v123 = vpop.f32.mrb[0].mxu0
    %v124 = vadd.f32 0.0, %v123
    %v125 = vpop.f32.mrb[0].mxu0
    %126 = vmatprep.mubr.f32.mxu0 0.0
    %127 = vmatmul.mubr.f32.gmra.mrb[0].mxu0 %v55
    %v128 = vpop.f32.mrb[0].mxu0
    %v129 = vadd.f32 0.0, %v128
    %v130 = vpop.f32.mrb[0].mxu0
    %131 = vdwg.mxu0
    %v132 = vmul.f32 %v124, 11.313708
    %v133 = vmul.f32 %v129, 11.313708
    %134 = vst [vmem:[#allocation5] sm:$0xff] %v132
    %135 = vst [vmem:[#allocation5 + $0x8] sm:$0xff] %v133
    // Predicated region
    $region14: #{embedding.1} parent=1 // pred_check
      _
    $region15: #{embedding.1} parent=1 // pred_check_branch
      %137 = sbr.rel (0) target = $region17
    $region16: #{embedding.1} parent=1 // pred_region
      %s139 = ssub.s32 256, 256
      %140 = vsyncadd [#allocation4], %s139
      %s141 = sshll.u32 [#allocation5], 4
      %s142 = int_to_ptr.vmem [resolvable:$true] %s141
      %147 = dma.vmem_to_hbm [thread:$0]  %s142, 256, %s2, [#allocation4], 128, 128, 8
    $region17: #{embedding.1} parent=1 // pred_fallthru
      _
    // Predicated region
    $region18: #{embedding.1} parent=1 // pred_check
      _
    $region19: #{embedding.1} parent=1 // pred_check_branch
      %149 = sbr.rel (0) target = $region21
    $region20: #{embedding.1} parent=1 // pred_region
      %150 = dma.done [#allocation4], 256
    $region21: #{embedding.1} parent=1 // pred_fallthru
      _
    %151 = vsyncpa [#allocation3], 1
    %152 = vsyncpa [#allocation4], 1

</llo_original>
